<compile_context>
chip_gen: v7x
topology: tpu7x:2x2x1
jax: 0.10.0
libtpu: 0.0.40
codegen_flags: <defaults>
</compile_context>

<pallas_src>
import functools

import jax
import jax.numpy as jnp
from jax.experimental import pallas as pl
from jax.experimental.pallas import tpu as pltpu


def _round_up(x, m):
    return (x + m - 1) // m * m


def _conv_bn_relu_kernel(x_ref, w_ref, scale_ref, shift_ref, o_ref, *,
                         kh_size, tile_h, wo, k_pad):
    # x_ref:     (H_rows*Wo, k_pad)      bf16, KW*Cin folded (lane-dense) image slab
    # w_ref:     (KH, k_pad, cout_tile)  bf16, taps along KH, KW*Cin folded into K
    # scale_ref: (1, cout_tile)          f32 folded BN scale  = gamma / sqrt(var+eps)
    # shift_ref: (1, cout_tile)          f32 folded BN shift  = beta - mean*scale
    # o_ref:     (m, cout_tile)          f32 lane-dense output slab for this row tile
    m = tile_h * wo
    t = pl.program_id(2)
    row0 = pl.multiple_of(t * m, m)        # flattened (h*Wo) row of this tile; m % 8 == 0

    # Direct conv with taps folded along W: KH matmuls, K = k_pad >= 128.
    # Accumulate in registers (m*cout_tile f32 <= ~16-32 vregs); single store below.
    acc = None
    for kh in range(kh_size):
        lhs = x_ref[pl.ds(row0 + kh * wo, m), :]                  # (m, k_pad), aligned slice
        part = jnp.dot(lhs, w_ref[kh], preferred_element_type=jnp.float32)
        acc = part if acc is None else acc + part

    # Fused BN (f32) + ReLU epilogue; one dense unmasked store (last dim = 128-multiple).
    y = acc * scale_ref[...] + shift_ref[...]
    o_ref[...] = jnp.maximum(y, 0.0).astype(o_ref.dtype)


def basic_conv2d(x_nchw, weight_oihw, gamma, beta, running_mean, running_var,
                 *, stride=1, padding=1, eps=1e-3):
    """BasicConv2d forward. x_nchw: (N, Cin, H, W), weight_oihw: (Cout, Cin, KH, KW)."""
    if stride != 1:
        # TODO(synk): only stride=1 implemented in the Pallas kernel.
        raise NotImplementedError("stride != 1 not implemented")

    N, Cin, H, W = x_nchw.shape
    Cout, _, KH, KW = weight_oihw.shape

    Hp, Wp = H + 2 * padding, W + 2 * padding
    Ho, Wo = Hp - KH + 1, Wp - KW + 1

    # --- tiling choices ---
    cout_pad = max(128, _round_up(Cout, 128))
    cout_tile = 256 if cout_pad % 256 == 0 else 128      # wider N tile when it divides
    n_co = cout_pad // cout_tile

    # Row tile: multiple of 8 so m = tile_h*Wo is a sublane multiple (unmasked stores).
    # TODO(synk): target m ~ 256 on v6e/v7x 256x256 MXUs when register budget allows.
    tile_h = 8
    while tile_h * Wo < 128 and tile_h < _round_up(Ho, 8):
        tile_h += 8
    n_th = -(-Ho // tile_h)
    ho_pad = n_th * tile_h                               # extra rows cropped after the call
    m = tile_h * Wo

    k_raw = KW * Cin
    k_pad = max(128, _round_up(k_raw, 128))              # lane-dense contraction dim
    h_rows = ho_pad + KH - 1                             # padded-image rows the kernel reads

    # --- glue: layout conversion, padding, KW-fold, BN folding (plain JAX) ---
    # TODO(synk): for large-Cin layers (Cin >= 128) skip the KW fold and contract over
    # Cin directly; for huge feature maps on v7x use halo row-tiles instead of keeping
    # the whole per-image slab resident.
    x_nhwc = jnp.transpose(x_nchw, (0, 2, 3, 1))                       # (N, H, W, Cin)
    x_padded = jnp.pad(
        x_nhwc,
        ((0, 0), (padding, padding + (ho_pad - Ho)), (padding, padding), (0, 0)))
    # Fold the KW taps into the channel dim: ch = kw*Cin + c  ->  x[h, w+kw, c]
    x_fold = jnp.concatenate([x_padded[:, :, kw:kw + Wo, :] for kw in range(KW)],
                             axis=-1)                                  # (N, h_rows, Wo, KW*Cin)
    x_fold = jnp.pad(x_fold, ((0, 0), (0, 0), (0, 0), (0, k_pad - k_raw)))
    x_fold = x_fold.reshape(N, h_rows * Wo, k_pad).astype(jnp.bfloat16)

    # Weights: (Cout, Cin, KH, KW) -> (KH, KW, Cin, Cout) -> (KH, KW*Cin, Cout), pad, bf16.
    w_fold = jnp.transpose(weight_oihw, (2, 3, 1, 0)).reshape(KH, k_raw, Cout)
    w_fold = jnp.pad(w_fold, ((0, 0), (0, k_pad - k_raw), (0, cout_pad - Cout)))
    w_fold = w_fold.astype(jnp.bfloat16)                               # (KH, k_pad, cout_pad)

    # BN (eval mode) kept in f32 and applied in the kernel epilogue.
    scale = (gamma / jnp.sqrt(running_var + eps)).astype(jnp.float32)
    shift = (beta - running_mean * scale).astype(jnp.float32)
    scale_pad = jnp.pad(scale, (0, cout_pad - Cout)).reshape(1, cout_pad)
    shift_pad = jnp.pad(shift, (0, cout_pad - Cout)).reshape(1, cout_pad)

    kernel = functools.partial(_conv_bn_relu_kernel,
                               kh_size=KH, tile_h=tile_h, wo=Wo, k_pad=k_pad)

    flops = 2 * N * Ho * Wo * KH * KW * Cin * Cout
    bytes_accessed = (2 * x_fold.size + 2 * w_fold.size
                      + 4 * (scale_pad.size + shift_pad.size)
                      + 4 * N * ho_pad * Wo * cout_pad)

    # TODO(synk): single-buffer the grid-constant weight/scale/shift blocks
    # (pipeline_mode=pl.Buffered(1)) to halve their VMEM footprint on v7x.
    out_flat = pl.pallas_call(
        kernel,
        out_shape=jax.ShapeDtypeStruct((N, ho_pad * Wo, cout_pad), jnp.float32),
        grid_spec=pltpu.PrefetchScalarGridSpec(
            num_scalar_prefetch=0,
            grid=(N, n_co, n_th),        # row-tile axis innermost: image & weights stay resident
            in_specs=[
                pl.BlockSpec((None, h_rows * Wo, k_pad), lambda n, co, t: (n, 0, 0)),
                pl.BlockSpec((KH, k_pad, cout_tile), lambda n, co, t: (0, 0, co)),
                pl.BlockSpec((1, cout_tile), lambda n, co, t: (0, co)),
                pl.BlockSpec((1, cout_tile), lambda n, co, t: (0, co)),
            ],
            out_specs=pl.BlockSpec((None, m, cout_tile), lambda n, co, t: (n, t, co)),
        ),
        compiler_params=pltpu.CompilerParams(
            dimension_semantics=("parallel", "parallel", "parallel"),
            vmem_limit_bytes=48 * 1024 * 1024,
        ),
        cost_estimate=pl.CostEstimate(flops=flops, transcendentals=0,
                                      bytes_accessed=int(bytes_accessed)),
    )(x_fold, w_fold, scale_pad, shift_pad)

    # Layout plumbing back to PyTorch-style NCHW (strip row / channel padding).
    out_nhwc = out_flat.reshape(N, ho_pad, Wo, cout_pad)[:, :Ho, :, :Cout]
    return jnp.transpose(out_nhwc, (0, 3, 1, 2))


def _reference(x_nchw, weight_oihw, gamma, beta, running_mean, running_var,
               *, padding=1, eps=1e-3, cast_bf16=False):
    if cast_bf16:
        x_nchw = x_nchw.astype(jnp.bfloat16).astype(jnp.float32)
        weight_oihw = weight_oihw.astype(jnp.bfloat16).astype(jnp.float32)
    y = jax.lax.conv_general_dilated(
        x_nchw, weight_oihw, window_strides=(1, 1),
        padding=[(padding, padding), (padding, padding)],
        dimension_numbers=("NCHW", "OIHW", "NCHW"),
        precision=jax.lax.Precision.HIGHEST)
    scale = gamma / jnp.sqrt(running_var + eps)
    shift = beta - running_mean * scale
    y = y * scale[None, :, None, None] + shift[None, :, None, None]
    return jnp.maximum(y, 0.0)


if __name__ == "__main__":
    key = jax.random.PRNGKey(0)
    k_x, k_w, k_g, k_b, k_m, k_v = jax.random.split(key, 6)

    # Shapes consistent with BasicConv2d(in_channels=4, out_channels=8,
    # kernel_size=3, padding=1) on a (2, 4, 16, 16) NCHW input.
    N, Cin, H, W = 2, 4, 16, 16
    Cout, KH, KW = 8, 3, 3

    x = jax.random.normal(k_x, (N, Cin, H, W), dtype=jnp.float32)
    weight = jax.random.normal(k_w, (Cout, Cin, KH, KW), dtype=jnp.float32) * 0.1
    gamma = jax.random.uniform(k_g, (Cout,), minval=0.5, maxval=1.5, dtype=jnp.float32)
    beta = jax.random.normal(k_b, (Cout,), dtype=jnp.float32) * 0.1
    running_mean = jax.random.normal(k_m, (Cout,), dtype=jnp.float32) * 0.1
    running_var = jax.random.uniform(k_v, (Cout,), minval=0.5, maxval=1.5, dtype=jnp.float32)

    out = basic_conv2d(x, weight, gamma, beta, running_mean, running_var,
                       stride=1, padding=1, eps=1e-3)
    out = jax.block_until_ready(out)
    assert out.shape == (N, Cout, H, W)

    # Tight check against an f32 reference on the same bf16-quantized inputs
    # (validates the conv + BN + ReLU math of the kernel exactly).
    ref_bf16 = _reference(x, weight, gamma, beta, running_mean, running_var,
                          padding=1, eps=1e-3, cast_bf16=True)
    assert jnp.allclose(out, ref_bf16, atol=1e-3, rtol=1e-3)

    # Looser check against the full-f32 module semantics (bf16 input rounding only).
    ref_f32 = _reference(x, weight, gamma, beta, running_mean, running_var,
                         padding=1, eps=1e-3, cast_bf16=False)
    assert jnp.allclose(out, ref_f32, atol=5e-2, rtol=5e-2)

    print("KERNEL_OK")
</pallas_src>

<mosaic_0001>
module attributes {stable_mosaic.version = 11 : i64} {
  func.func @_conv_bn_relu_kernel(%arg0: i32, %arg1: i32, %arg2: i32, %arg3: memref<1x288x128xbf16, #tpu.memory_space<vmem>>, %arg4: memref<3x128x128xbf16, #tpu.memory_space<vmem>>, %arg5: memref<1x128xf32, #tpu.memory_space<vmem>>, %arg6: memref<1x128xf32, #tpu.memory_space<vmem>>, %arg7: memref<1x128x128xf32, #tpu.memory_space<vmem>>) attributes {dimension_semantics = [#tpu.dimension_semantics<parallel>, #tpu.dimension_semantics<parallel>, #tpu.dimension_semantics<parallel>], iteration_bounds = array<i64: 2, 1, 2>, scalar_prefetch = 0 : i64, scratch_operands = 0 : i64, tpu.core_type = #tpu.core_type<tc>, window_params = [{transform_indices = @transform_0, window_bounds = array<i64: 1, 288, 128>}, {transform_indices = @transform_1, window_bounds = array<i64: 3, 128, 128>}, {transform_indices = @transform_2, window_bounds = array<i64: 1, 128>}, {transform_indices = @transform_3, window_bounds = array<i64: 1, 128>}, {transform_indices = @transform_4, window_bounds = array<i64: 1, 128, 128>}]} {
    %c128_i32 = arith.constant 128 : i32
    %0 = arith.muli %arg2, %c128_i32 : i32
    %1 = tpu.assume_multiple %0, 128 : i32
    %c0_i32 = arith.constant 0 : i32
    %2 = arith.addi %1, %c0_i32 : i32
    %c0 = arith.constant 0 : index
    %3 = arith.index_cast %2 : i32 to index
    %c0_0 = arith.constant 0 : index
    %4 = vector.load %arg3[%c0, %3, %c0_0] : memref<1x288x128xbf16, #tpu.memory_space<vmem>>, vector<1x128x128xbf16>
    %5 = vector.shape_cast %4 : vector<1x128x128xbf16> to vector<128x128xbf16>
    %c0_1 = arith.constant 0 : index
    %c0_2 = arith.constant 0 : index
    %c0_3 = arith.constant 0 : index
    %6 = vector.load %arg4[%c0_1, %c0_2, %c0_3] : memref<3x128x128xbf16, #tpu.memory_space<vmem>>, vector<1x128x128xbf16>
    %7 = vector.shape_cast %6 : vector<1x128x128xbf16> to vector<128x128xbf16>
    %cst = arith.constant dense<0.000000e+00> : vector<128x128xf32>
    %8 = tpu.matmul %5, %7, %cst {dimension_numbers = #tpu.dot_dimension_numbers<[1], [0], [0], [1], [0, 0, 1, 1], [], []>} : vector<128x128xbf16>, vector<128x128xbf16>, vector<128x128xf32> -> vector<128x128xf32>
    %c16_i32 = arith.constant 16 : i32
    %9 = arith.addi %1, %c16_i32 : i32
    %c0_4 = arith.constant 0 : index
    %10 = arith.index_cast %9 : i32 to index
    %c0_5 = arith.constant 0 : index
    %11 = vector.load %arg3[%c0_4, %10, %c0_5] : memref<1x288x128xbf16, #tpu.memory_space<vmem>>, vector<1x128x128xbf16>
    %12 = vector.shape_cast %11 : vector<1x128x128xbf16> to vector<128x128xbf16>
    %c1 = arith.constant 1 : index
    %c0_6 = arith.constant 0 : index
    %c0_7 = arith.constant 0 : index
    %13 = vector.load %arg4[%c1, %c0_6, %c0_7] : memref<3x128x128xbf16, #tpu.memory_space<vmem>>, vector<1x128x128xbf16>
    %14 = vector.shape_cast %13 : vector<1x128x128xbf16> to vector<128x128xbf16>
    %cst_8 = arith.constant dense<0.000000e+00> : vector<128x128xf32>
    %15 = tpu.matmul %12, %14, %cst_8 {dimension_numbers = #tpu.dot_dimension_numbers<[1], [0], [0], [1], [0, 0, 1, 1], [], []>} : vector<128x128xbf16>, vector<128x128xbf16>, vector<128x128xf32> -> vector<128x128xf32>
    %16 = arith.addf %8, %15 : vector<128x128xf32>
    %c32_i32 = arith.constant 32 : i32
    %17 = arith.addi %1, %c32_i32 : i32
    %c0_9 = arith.constant 0 : index
    %18 = arith.index_cast %17 : i32 to index
    %c0_10 = arith.constant 0 : index
    %19 = vector.load %arg3[%c0_9, %18, %c0_10] : memref<1x288x128xbf16, #tpu.memory_space<vmem>>, vector<1x128x128xbf16>
    %20 = vector.shape_cast %19 : vector<1x128x128xbf16> to vector<128x128xbf16>
    %c2 = arith.constant 2 : index
    %c0_11 = arith.constant 0 : index
    %c0_12 = arith.constant 0 : index
    %21 = vector.load %arg4[%c2, %c0_11, %c0_12] : memref<3x128x128xbf16, #tpu.memory_space<vmem>>, vector<1x128x128xbf16>
    %22 = vector.shape_cast %21 : vector<1x128x128xbf16> to vector<128x128xbf16>
    %cst_13 = arith.constant dense<0.000000e+00> : vector<128x128xf32>
    %23 = tpu.matmul %20, %22, %cst_13 {dimension_numbers = #tpu.dot_dimension_numbers<[1], [0], [0], [1], [0, 0, 1, 1], [], []>} : vector<128x128xbf16>, vector<128x128xbf16>, vector<128x128xf32> -> vector<128x128xf32>
    %24 = arith.addf %16, %23 : vector<128x128xf32>
    %c0_14 = arith.constant 0 : index
    %c0_15 = arith.constant 0 : index
    %25 = vector.load %arg5[%c0_14, %c0_15] : memref<1x128xf32, #tpu.memory_space<vmem>>, vector<1x128xf32>
    %26 = vector.broadcast %25 : vector<1x128xf32> to vector<128x128xf32>
    %27 = arith.mulf %24, %26 : vector<128x128xf32>
    %c0_16 = arith.constant 0 : index
    %c0_17 = arith.constant 0 : index
    %28 = vector.load %arg6[%c0_16, %c0_17] : memref<1x128xf32, #tpu.memory_space<vmem>>, vector<1x128xf32>
    %29 = vector.broadcast %28 : vector<1x128xf32> to vector<128x128xf32>
    %30 = arith.addf %27, %29 : vector<128x128xf32>
    %cst_18 = arith.constant 0.000000e+00 : f32
    %31 = vector.broadcast %cst_18 : f32 to vector<128x128xf32>
    %32 = arith.maximumf %30, %31 : vector<128x128xf32>
    %c0_19 = arith.constant 0 : index
    %c0_20 = arith.constant 0 : index
    %c0_21 = arith.constant 0 : index
    %33 = vector.load %arg7[%c0_19, %c0_20, %c0_21] : memref<1x128x128xf32, #tpu.memory_space<vmem>>, vector<1x128x128xf32>
    %34 = vector.shape_cast %33 : vector<1x128x128xf32> to vector<128x128xf32>
    %35 = vector.shape_cast %32 : vector<128x128xf32> to vector<1x128x128xf32>
    tpu.vector_store %arg7[%c0_19, %c0_20, %c0_21], %35 {strides = array<i32>} : memref<1x128x128xf32, #tpu.memory_space<vmem>>, vector<1x128x128xf32>,
    return
  }
  func.func @transform_0(%arg0: i32, %arg1: i32, %arg2: i32) -> (i32, i32, i32) {
    %c0_i32 = arith.constant 0 : i32
    %c0_i32_0 = arith.constant 0 : i32
    %c0_i32_1 = arith.constant 0 : i32
    return %arg0, %c0_i32, %c0_i32_0 : i32, i32, i32
  }
  func.func @transform_1(%arg0: i32, %arg1: i32, %arg2: i32) -> (i32, i32, i32) {
    %c0_i32 = arith.constant 0 : i32
    %c0_i32_0 = arith.constant 0 : i32
    %c0_i32_1 = arith.constant 0 : i32
    return %c0_i32, %c0_i32_0, %arg1 : i32, i32, i32
  }
  func.func @transform_2(%arg0: i32, %arg1: i32, %arg2: i32) -> (i32, i32) {
    %c0_i32 = arith.constant 0 : i32
    %c0_i32_0 = arith.constant 0 : i32
    return %c0_i32, %arg1 : i32, i32
  }
  func.func @transform_3(%arg0: i32, %arg1: i32, %arg2: i32) -> (i32, i32) {
    %c0_i32 = arith.constant 0 : i32
    %c0_i32_0 = arith.constant 0 : i32
    return %c0_i32, %arg1 : i32, i32
  }
  func.func @transform_4(%arg0: i32, %arg1: i32, %arg2: i32) -> (i32, i32, i32) {
    %c0_i32 = arith.constant 0 : i32
    return %arg0, %arg2, %arg1 : i32, i32, i32
  }
}

</mosaic_0001>

<llo_original>
// kernel: tpu_custom_call.1
$region0: #{tpu_custom_call.1}
  #allocation0 [shape = 'u32[]', space=smem, size = 0x4, offset = 0x4, fixed_abs, tag = 'smem constant byte address 0x4 - core index']
  #allocation1 [shape = 'u32[144,128]{1,0:T(1,128)}', space=vmem, size = 0x12000, scoped, tag = 'internal scratch']
  %s0 = inlined_call_operand.hbm [shape: bf16[2,288,128], index: 0, kind: input, shape index: {}]
  %s1 = inlined_call_operand.hbm [shape: bf16[3,128,128], index: 1, kind: input, shape index: {}]
  %s2 = inlined_call_operand.vmem [shape: f32[1,128], index: 2, kind: input, shape index: {}]
  %s3 = inlined_call_operand.vmem [shape: f32[1,128], index: 3, kind: input, shape index: {}]
  %s4 = inlined_call_operand.hbm [shape: f32[2,256,128], index: 4, kind: output, shape index: {}]
  %s5 = sld [smem:[#allocation0]]
  $region57: #{tpu_custom_call.1} parent=0
    _
  %s7 = ssub.s32 1, %s5
  %s8 = scalar_select 0, %s7, %s5
  $region1: #{tpu_custom_call.1} parent=0
    #allocation2 [shape = 'u8[147456]{0}', space=vmem, size = 0x24000, scoped, tag = 'input window, operand 0']
    #allocation3 [shape = 's32[2]{0}', space=sflag, size = 0x8, scoped, tag = 'scoped memory for tpu_custom_call.1']
    #allocation4 [shape = 's32[2]{0}', space=sflag, size = 0x8, scoped, tag = 'scoped memory for tpu_custom_call.1']
    #allocation5 [shape = 'u8[98304]{0}', space=vmem, size = 0x18000, scoped, tag = 'input window, operand 1, single buffered']
    #allocation6 [shape = 's32[1]{0}', space=sflag, size = 0x4, scoped, tag = 'scoped memory for tpu_custom_call.1']
    #allocation7 [shape = 'u8[131072]{0}', space=vmem, size = 0x20000, scoped, tag = 'output window, operand 0']
    %9 = vsyncpa [#allocation3], 0
    %s10 = scalar_lea.sflag [#allocation3], 1
    %11 = vsyncpa %s10, 0
    %12 = vsyncpa [#allocation6], 0
    %13 = vsyncpa [#allocation4], 0
    %s14 = scalar_lea.sflag [#allocation4], 1
    %15 = vsyncpa %s14, 0
    loop: start=0, step=1, limit=6
    $region2: #{tpu_custom_call.1} parent=1 // loop_pre_header
      _
    $region3: #{tpu_custom_call.1} parent=1 // loop_header
      %s17 = sphi 0, %s21
      %p18 = scmp.ge.s32.totalorder %s17, 6
      %s24 = sphi 0, %s43
      %s25 = sphi 0, %s39
      %s26 = sphi 0, %s35
      %s27 = sphi 0, %s24
      %s28 = sphi 0, %s25
      %s29 = sphi 0, %s26
      %s30 = sphi 0, %s27
      %s31 = sphi 0, %s28
      %s32 = sphi 0, %s29
      %s46 = sphi 0, %s48
      %s49 = sphi 0, %s46
      %s50 = sphi 0, %s49
      %s66 = sphi 0, %s50
      %s72 = sphi 0, %s74
      %s75 = sphi 0, %s72
      %s76 = sphi 0, %s75
      %s92 = sphi 0, %s76
      %s98 = sphi 0, %s100
      %s101 = sphi 0, %s98
      %s102 = sphi 0, %s101
      %s118 = sphi 0, %s102
      %s124 = sphi 0, %s126
      %s127 = sphi 0, %s124
      %s128 = sphi 0, %s127
      %s144 = sphi 0, %s128
      %s154 = sphi 0, %s156
      %s157 = sphi 0, %s154
      %s158 = sphi 0, %s157
      %s174 = sphi 0, %s158
    $region4: #{tpu_custom_call.1} parent=1 // loop_header_branch
      %20 = sbr.rel (%p18) target = $region8
    $region5: #{tpu_custom_call.1} parent=1 // loop_body
      %s22 = ssub.s32 %s17, 1
      %s23 = ssub.s32 %s17, 2
      %s33 = sadd.s32 1, %s26
      %p34 = scmp.ge.s32.totalorder %s33, 2
      %s35 = scalar_select %p34, 0, %s33
      %s36 = sadd.s32 1, %s25
      %s37 = scalar_select %p34, %s36, %s25
      %p38 = scmp.ge.s32.totalorder %s37, 1
      %s39 = scalar_select %p38, 0, %s37
      %s40 = sadd.s32 1, %s24
      %s41 = scalar_select %p38, %s40, %s24
      %p42 = scmp.ge.s32.totalorder %s41, 2
      %s43 = scalar_select %p42, 0, %s41
      %s44 = ssub.s32 %s24, %s43
      %p45 = scmp.eq.s32.totalorder %s44, 0
      %s47 = sadd.s32 %s46, 1
      %s48 = scalar_select %p45, %s46, %s47
      %p51 = pneg %p45
      %p52 = scmp.eq.s32.totalorder %s17, 3
      %p53 = por %p51, %p52
      %p54 = scmp.ne.s32.totalorder %s46, %s49
      %p55 = scmp.eq.s32.totalorder %s17, 0
      %p56 = por %p54, %p55
      %p57 = scmp.ne.s32.totalorder %s46, %s49
      %p58 = scmp.eq.s32.totalorder %s22, 3
      %p59 = por %p57, %p58
      %p60 = scmp.ne.s32.totalorder %s49, %s50
      %p61 = scmp.eq.s32.totalorder %s22, 0
      %p62 = por %p60, %p61
      %p63 = scmp.ne.s32.totalorder %s49, %s50
      %p64 = scmp.eq.s32.totalorder %s23, 3
      %p65 = por %p63, %p64
      %p67 = scmp.ne.s32.totalorder %s50, %s66
      %p68 = scmp.eq.s32.totalorder %s23, 0
      %p69 = por %p67, %p68
      %s70 = ssub.s32 %s25, %s39
      %p71 = scmp.eq.s32.totalorder %s70, 0
      %s73 = sadd.s32 %s72, 1
      %s74 = scalar_select %p71, %s72, %s73
      %p77 = pneg %p71
      %p78 = scmp.eq.s32.totalorder %s17, 3
      %p79 = por %p77, %p78
      %p80 = scmp.ne.s32.totalorder %s72, %s75
      %p81 = scmp.eq.s32.totalorder %s17, 0
      %p82 = por %p80, %p81
      %p83 = scmp.ne.s32.totalorder %s72, %s75
      %p84 = scmp.eq.s32.totalorder %s22, 3
      %p85 = por %p83, %p84
      %p86 = scmp.ne.s32.totalorder %s75, %s76
      %p87 = scmp.eq.s32.totalorder %s22, 0
      %p88 = por %p86, %p87
      %p89 = scmp.ne.s32.totalorder %s75, %s76
      %p90 = scmp.eq.s32.totalorder %s23, 3
      %p91 = por %p89, %p90
      %p93 = scmp.ne.s32.totalorder %s76, %s92
      %p94 = scmp.eq.s32.totalorder %s23, 0
      %p95 = por %p93, %p94
      %s96 = ssub.s32 %s25, %s39
      %p97 = scmp.eq.s32.totalorder %s96, 0
      %s99 = sadd.s32 %s98, 1
      %s100 = scalar_select %p97, %s98, %s99
      %p103 = pneg %p97
      %p104 = scmp.eq.s32.totalorder %s17, 3
      %p105 = por %p103, %p104
      %p106 = scmp.ne.s32.totalorder %s98, %s101
      %p107 = scmp.eq.s32.totalorder %s17, 0
      %p108 = por %p106, %p107
      %p109 = scmp.ne.s32.totalorder %s98, %s101
      %p110 = scmp.eq.s32.totalorder %s22, 3
      %p111 = por %p109, %p110
      %p112 = scmp.ne.s32.totalorder %s101, %s102
      %p113 = scmp.eq.s32.totalorder %s22, 0
      %p114 = por %p112, %p113
      %p115 = scmp.ne.s32.totalorder %s101, %s102
      %p116 = scmp.eq.s32.totalorder %s23, 3
      %p117 = por %p115, %p116
      %p119 = scmp.ne.s32.totalorder %s102, %s118
      %p120 = scmp.eq.s32.totalorder %s23, 0
      %p121 = por %p119, %p120
      %s122 = ssub.s32 %s25, %s39
      %p123 = scmp.eq.s32.totalorder %s122, 0
      %s125 = sadd.s32 %s124, 1
      %s126 = scalar_select %p123, %s124, %s125
      %p129 = pneg %p123
      %p130 = scmp.eq.s32.totalorder %s17, 3
      %p131 = por %p129, %p130
      %p132 = scmp.ne.s32.totalorder %s124, %s127
      %p133 = scmp.eq.s32.totalorder %s17, 0
      %p134 = por %p132, %p133
      %p135 = scmp.ne.s32.totalorder %s124, %s127
      %p136 = scmp.eq.s32.totalorder %s22, 3
      %p137 = por %p135, %p136
      %p138 = scmp.ne.s32.totalorder %s127, %s128
      %p139 = scmp.eq.s32.totalorder %s22, 0
      %p140 = por %p138, %p139
      %p141 = scmp.ne.s32.totalorder %s127, %s128
      %p142 = scmp.eq.s32.totalorder %s23, 3
      %p143 = por %p141, %p142
      %p145 = scmp.ne.s32.totalorder %s128, %s144
      %p146 = scmp.eq.s32.totalorder %s23, 0
      %p147 = por %p145, %p146
      %s148 = ssub.s32 %s24, %s43
      %s149 = ssub.s32 %s26, %s35
      %s150 = sor.u32 %s148, %s149
      %s151 = ssub.s32 %s25, %s39
      %s152 = sor.u32 %s150, %s151
      %p153 = scmp.eq.s32.totalorder %s152, 0
      %s155 = sadd.s32 %s154, 1
      %s156 = scalar_select %p153, %s154, %s155
      %p159 = pneg %p153
      %p160 = scmp.eq.s32.totalorder %s17, 3
      %p161 = por %p159, %p160
      %p162 = scmp.ne.s32.totalorder %s154, %s157
      %p163 = scmp.eq.s32.totalorder %s17, 0
      %p164 = por %p162, %p163
      %p165 = scmp.ne.s32.totalorder %s154, %s157
      %p166 = scmp.eq.s32.totalorder %s22, 3
      %p167 = por %p165, %p166
      %p168 = scmp.ne.s32.totalorder %s157, %s158
      %p169 = scmp.eq.s32.totalorder %s22, 0
      %p170 = por %p168, %p169
      %p171 = scmp.ne.s32.totalorder %s157, %s158
      %p172 = scmp.eq.s32.totalorder %s23, 3
      %p173 = por %p171, %p172
      %p175 = scmp.ne.s32.totalorder %s158, %s174
      %p176 = scmp.eq.s32.totalorder %s23, 0
      %p177 = por %p175, %p176
      %p178 = scmp.le.s32.totalorder 1, %s17
      %p179 = scmp.lt.s32.totalorder %s17, 5
      %p180 = pnand %p178, %p179
      %p181 = pneg %p180
      // Predicated region
      $region9: #{tpu_custom_call.1} parent=5 // pred_check
        _
      $region10: #{tpu_custom_call.1} parent=5 // pred_check_branch
        %183 = sbr.rel (%p180) target = $region12
      $region11: #{tpu_custom_call.1} parent=5 // pred_region
        %s184 = ssub.s32 %s17, 1
        // Predicated region
        $region13: #{tpu_custom_call.1} parent=11 // pred_check
          %p185 = pneg %p88
        $region14: #{tpu_custom_call.1} parent=11 // pred_check_branch
          %187 = sbr.rel (%p185) target = $region16
        $region15: #{tpu_custom_call.1} parent=11 // pred_region
          %s189 = ssub.s32 3072, 3072
          %190 = vsyncadd [#allocation6], %s189
          %s191 = smul.addr %s28, 64
          %s192 = scalar_lea.hbm %s1, %s191
          %s193 = sshll.u32 [#allocation5], 4
          %s194 = int_to_ptr.vmem [resolvable:$true] %s193
          %199 = dma.hbm_to_vmem [thread:$0]  %s192, 3072, %s194, [#allocation6], 64, 64, 4
        $region16: #{tpu_custom_call.1} parent=11 // pred_fallthru
          _
        // Predicated region
        $region17: #{tpu_custom_call.1} parent=11 // pred_check
          %p200 = pneg %p114
        $region18: #{tpu_custom_call.1} parent=11 // pred_check_branch
          %202 = sbr.rel (%p200) target = $region20
        $region19: #{tpu_custom_call.1} parent=11 // pred_region
          %p203 = scmp.lt.s32.totalorder %s28, 0
          %s204 = scalar_select %p203, %s28, 0
          %s205 = scalar_lea.vmem %s2, %s204
        $region20: #{tpu_custom_call.1} parent=11 // pred_fallthru
          _
        // Predicated region
        $region21: #{tpu_custom_call.1} parent=11 // pred_check
          %p206 = pneg %p140
        $region22: #{tpu_custom_call.1} parent=11 // pred_check_branch
          %208 = sbr.rel (%p206) target = $region24
        $region23: #{tpu_custom_call.1} parent=11 // pred_region
          %p209 = scmp.lt.s32.totalorder %s28, 0
          %s210 = scalar_select %p209, %s28, 0
          %s211 = scalar_lea.vmem %s3, %s210
        $region24: #{tpu_custom_call.1} parent=11 // pred_fallthru
          _
      $region12: #{tpu_custom_call.1} parent=5 // pred_fallthru
        _
      %p212 = scmp.lt.s32.totalorder %s17, 4
      // Predicated region
      $region25: #{tpu_custom_call.1} parent=5 // pred_check
        %p213 = pneg %p212
      $region26: #{tpu_custom_call.1} parent=5 // pred_check_branch
        %215 = sbr.rel (%p213) target = $region28
      $region27: #{tpu_custom_call.1} parent=5 // pred_region
        // Predicated region
        $region29: #{tpu_custom_call.1} parent=27 // pred_check
          %p216 = pneg %p56
        $region30: #{tpu_custom_call.1} parent=27 // pred_check_branch
          %218 = sbr.rel (%p216) target = $region32
        $region31: #{tpu_custom_call.1} parent=27 // pred_region
          %s219 = sand.u32 %s46, 1
          %s220 = scalar_lea.sflag [#allocation3], %s219
          %s221 = sand.u32 %s46, 1
          %s222 = smul.addr %s221, 144
          %s223 = scalar_lea.vmem [#allocation2], %s222
          %s225 = ssub.s32 2304, 2304
          %226 = vsyncadd %s220, %s225
          %s227 = smul.addr %s24, 36
          %s228 = smul.addr %s227, 64
          %s229 = scalar_lea.hbm %s0, %s228
          %s230 = sshll.u32 %s223, 4
          %s231 = int_to_ptr.vmem [resolvable:$true] %s230
          %236 = dma.hbm_to_vmem [thread:$0]  %s229, 2304, %s231, %s220, 64, 64, 4
        $region32: #{tpu_custom_call.1} parent=27 // pred_fallthru
          _
      $region28: #{tpu_custom_call.1} parent=5 // pred_fallthru
        _
      %p237 = scmp.le.s32.totalorder 1, %s17
      %p238 = scmp.lt.s32.totalorder %s17, 5
      %p239 = pnand %p237, %p238
      %p240 = pneg %p239
      // Predicated region
      $region33: #{tpu_custom_call.1} parent=5 // pred_check
        _
      $region34: #{tpu_custom_call.1} parent=5 // pred_check_branch
        %242 = sbr.rel (%p239) target = $region36
      $region35: #{tpu_custom_call.1} parent=5 // pred_region
        %s243 = ssub.s32 %s17, 1
        %s244 = sand.u32 %s49, 1
        %s245 = scalar_lea.sflag [#allocation3], %s244
        %s246 = sand.u32 %s49, 1
        %s247 = smul.addr %s246, 144
        %s248 = scalar_lea.vmem [#allocation2], %s247
        // Predicated region
        $region37: #{tpu_custom_call.1} parent=35 // pred_check
          %p249 = pneg %p62
        $region38: #{tpu_custom_call.1} parent=35 // pred_check_branch
          %251 = sbr.rel (%p249) target = $region40
        $region39: #{tpu_custom_call.1} parent=35 // pred_region
          %252 = dma.done %s245, 2304
        $region40: #{tpu_custom_call.1} parent=35 // pred_fallthru
          _
        // Predicated region
        $region41: #{tpu_custom_call.1} parent=35 // pred_check
          %p253 = pneg %p88
        $region42: #{tpu_custom_call.1} parent=35 // pred_check_branch
          %255 = sbr.rel (%p253) target = $region44
        $region43: #{tpu_custom_call.1} parent=35 // pred_region
          %256 = dma.done [#allocation6], 3072
        $region44: #{tpu_custom_call.1} parent=35 // pred_fallthru
          _
        %s257 = sand.u32 %s49, 1
        %s258 = scalar_lea.sflag [#allocation3], %s257
        %s259 = sand.u32 %s49, 1
        %s260 = smul.addr %s259, 144
        %s261 = scalar_lea.vmem [#allocation2], %s260
        %p262 = pneg %p62
        %p263 = pneg %p59
        %p264 = pneg %p88
        %p265 = pneg %p85
        %p266 = scmp.lt.s32.totalorder %s28, 0
        %s267 = scalar_select %p266, %s28, 0
        %s268 = scalar_lea.vmem %s2, %s267
        %p269 = pneg %p114
        %p270 = pneg %p111
        %p271 = scmp.lt.s32.totalorder %s28, 0
        %s272 = scalar_select %p271, %s28, 0
        %s273 = scalar_lea.vmem %s3, %s272
        %p274 = pneg %p140
        %p275 = pneg %p137
        %p276 = pneg %p170
        %p277 = pneg %p167
        %s278 = sand.u32 %s157, 1
        %s279 = scalar_lea.sflag [#allocation4], %s278
        %s280 = sand.u32 %s157, 1
        %s281 = smul.addr %s280, 128
        %s282 = scalar_lea.vmem [#allocation7], %s281
        %p283 = scmp.lt.s32.totalorder %s28, 0
        %s284 = scalar_select %p283, %s28, 0
        %s285 = scalar_lea.vmem %s2, %s284
        %p286 = scmp.lt.s32.totalorder %s28, 0
        %s287 = scalar_select %p286, %s28, 0
        %s288 = scalar_lea.vmem %s3, %s287
        %s289 = smul.u32 16, %s29
        %s291 = smul.u32 %s29, 128
        %s292 = sshra.s32 %s291, 3
        %s293 = sand.u32 %s291, 7
        %s294 = smul.addr %s292, 4
        %s295 = scalar_lea.vmem %s248, %s294 [#allocation2]
        %v296 = vld [vmem:[%s295] sm:$0xf]
        %v297 = vld [vmem:[%s295 + $0x4] sm:$0xf]
        %v298 = vld [vmem:[%s295 + $0x8] sm:$0xf]
        %v299 = vld [vmem:[%s295 + $0xc] sm:$0xf]
        %v300 = vld [vmem:[%s295 + $0x10] sm:$0xf]
        %v301 = vld [vmem:[%s295 + $0x14] sm:$0xf]
        %v302 = vld [vmem:[%s295 + $0x18] sm:$0xf]
        %v303 = vld [vmem:[%s295 + $0x1c] sm:$0xf]
        %v304 = vld [vmem:[%s295 + $0x20] sm:$0xf]
        %v305 = vld [vmem:[%s295 + $0x24] sm:$0xf]
        %v306 = vld [vmem:[%s295 + $0x28] sm:$0xf]
        %v307 = vld [vmem:[%s295 + $0x2c] sm:$0xf]
        %v308 = vld [vmem:[%s295 + $0x30] sm:$0xf]
        %v309 = vld [vmem:[%s295 + $0x34] sm:$0xf]
        %v310 = vld [vmem:[%s295 + $0x38] sm:$0xf]
        %v311 = vld [vmem:[%s295 + $0x3c] sm:$0xf]
        %v312 = vld [vmem:[#allocation5] sm:$0xf]
        %v313 = vld [vmem:[#allocation5 + $0x4] sm:$0xf]
        %v314 = vld [vmem:[#allocation5 + $0x8] sm:$0xf]
        %v315 = vld [vmem:[#allocation5 + $0xc] sm:$0xf]
        %v316 = vld [vmem:[#allocation5 + $0x10] sm:$0xf]
        %v317 = vld [vmem:[#allocation5 + $0x14] sm:$0xf]
        %v318 = vld [vmem:[#allocation5 + $0x18] sm:$0xf]
        %v319 = vld [vmem:[#allocation5 + $0x1c] sm:$0xf]
        %v320 = vld [vmem:[#allocation5 + $0x20] sm:$0xf]
        %v321 = vld [vmem:[#allocation5 + $0x24] sm:$0xf]
        %v322 = vld [vmem:[#allocation5 + $0x28] sm:$0xf]
        %v323 = vld [vmem:[#allocation5 + $0x2c] sm:$0xf]
        %v324 = vld [vmem:[#allocation5 + $0x30] sm:$0xf]
        %v325 = vld [vmem:[#allocation5 + $0x34] sm:$0xf]
        %v326 = vld [vmem:[#allocation5 + $0x38] sm:$0xf]
        %v327 = vld [vmem:[#allocation5 + $0x3c] sm:$0xf]
        %s328 = sadd.s32 %s291, 16
        %s329 = sshra.s32 %s328, 3
        %s330 = sand.u32 %s328, 7
        %s331 = smul.addr %s329, 4
        %s332 = scalar_lea.vmem %s248, %s331 [#allocation2]
        %v333 = vld [vmem:[%s332] sm:$0xf]
        %v334 = vld [vmem:[%s332 + $0x4] sm:$0xf]
        %v335 = vld [vmem:[%s332 + $0x8] sm:$0xf]
        %v336 = vld [vmem:[%s332 + $0xc] sm:$0xf]
        %v337 = vld [vmem:[%s332 + $0x10] sm:$0xf]
        %v338 = vld [vmem:[%s332 + $0x14] sm:$0xf]
        %v339 = vld [vmem:[%s332 + $0x18] sm:$0xf]
        %v340 = vld [vmem:[%s332 + $0x1c] sm:$0xf]
        %v341 = vld [vmem:[%s332 + $0x20] sm:$0xf]
        %v342 = vld [vmem:[%s332 + $0x24] sm:$0xf]
        %v343 = vld [vmem:[%s332 + $0x28] sm:$0xf]
        %v344 = vld [vmem:[%s332 + $0x2c] sm:$0xf]
        %v345 = vld [vmem:[%s332 + $0x30] sm:$0xf]
        %v346 = vld [vmem:[%s332 + $0x34] sm:$0xf]
        %v347 = vld [vmem:[%s332 + $0x38] sm:$0xf]
        %v348 = vld [vmem:[%s332 + $0x3c] sm:$0xf]
        %s349 = scalar_lea.vmem [#allocation5], 64
        %v350 = vld [vmem:[%s349] sm:$0xf]
        %v351 = vld [vmem:[%s349 + $0x4] sm:$0xf]
        %v352 = vld [vmem:[%s349 + $0x8] sm:$0xf]
        %v353 = vld [vmem:[%s349 + $0xc] sm:$0xf]
        %v354 = vld [vmem:[%s349 + $0x10] sm:$0xf]
        %v355 = vld [vmem:[%s349 + $0x14] sm:$0xf]
        %v356 = vld [vmem:[%s349 + $0x18] sm:$0xf]
        %v357 = vld [vmem:[%s349 + $0x1c] sm:$0xf]
        %v358 = vld [vmem:[%s349 + $0x20] sm:$0xf]
        %v359 = vld [vmem:[%s349 + $0x24] sm:$0xf]
        %v360 = vld [vmem:[%s349 + $0x28] sm:$0xf]
        %v361 = vld [vmem:[%s349 + $0x2c] sm:$0xf]
        %v362 = vld [vmem:[%s349 + $0x30] sm:$0xf]
        %v363 = vld [vmem:[%s349 + $0x34] sm:$0xf]
        %v364 = vld [vmem:[%s349 + $0x38] sm:$0xf]
        %v365 = vld [vmem:[%s349 + $0x3c] sm:$0xf]
        %v382 = vunpack.c.l.b16 %v333
        %v383 = vunpack.c.l.b16 %v334
        %v384 = vunpack.c.l.b16 %v335
        %v385 = vunpack.c.l.b16 %v336
        %v386 = vunpack.c.l.b16 %v337
        %v387 = vunpack.c.l.b16 %v338
        %v388 = vunpack.c.l.b16 %v339
        %v389 = vunpack.c.l.b16 %v340
        %v390 = vunpack.c.l.b16 %v341
        %v391 = vunpack.c.l.b16 %v342
        %v392 = vunpack.c.l.b16 %v343
        %v393 = vunpack.c.l.b16 %v344
        %v394 = vunpack.c.l.b16 %v345
        %v395 = vunpack.c.l.b16 %v346
        %v396 = vunpack.c.l.b16 %v347
        %v397 = vunpack.c.l.b16 %v348
        %v398 = vpack.c.b16 %v383, %v382
        %v399 = vpack.c.b16 %v385, %v384
        %v400 = vpack.c.b16 %v387, %v386
        %v401 = vpack.c.b16 %v389, %v388
        %v402 = vpack.c.b16 %v391, %v390
        %v403 = vpack.c.b16 %v393, %v392
        %v404 = vpack.c.b16 %v395, %v394
        %v405 = vpack.c.b16 %v397, %v396
        %v430 = vunpack.c.l.b16 %v350
        %v431 = vunpack.c.l.b16 %v351
        %v432 = vunpack.c.l.b16 %v352
        %v433 = vunpack.c.l.b16 %v353
        %v434 = vunpack.c.l.b16 %v354
        %v435 = vunpack.c.l.b16 %v355
        %v436 = vunpack.c.l.b16 %v356
        %v437 = vunpack.c.l.b16 %v357
        %v438 = vunpack.c.l.b16 %v358
        %v439 = vunpack.c.l.b16 %v359
        %v440 = vunpack.c.l.b16 %v360
        %v441 = vunpack.c.l.b16 %v361
        %v442 = vunpack.c.l.b16 %v362
        %v443 = vunpack.c.l.b16 %v363
        %v444 = vunpack.c.l.b16 %v364
        %v445 = vunpack.c.l.b16 %v365
        %v446 = vpack.c.b16 %v431, %v430
        %v447 = vpack.c.b16 %v433, %v432
        %v448 = vpack.c.b16 %v435, %v434
        %v449 = vpack.c.b16 %v437, %v436
        %v450 = vpack.c.b16 %v439, %v438
        %v451 = vpack.c.b16 %v441, %v440
        %v452 = vpack.c.b16 %v443, %v442
        %v453 = vpack.c.b16 %v445, %v444
        %462 = vmatprep.subr.bf16.mxu0 0
        %463 = vmatpush1.bf16.msra.mxu0 %v446
        %464 = vmatprep.subr.bf16.mxu0 0
        %465 = vmatpush1.bf16.msra.mxu0 %v447
        %466 = vmatprep.subr.bf16.mxu0 0
        %467 = vmatpush1.bf16.msra.mxu0 %v448
        %468 = vmatprep.subr.bf16.mxu0 0
        %469 = vmatpush1.bf16.msra.mxu0 %v449
        %470 = vmatprep.subr.bf16.mxu0 0
        %471 = vmatpush1.bf16.msra.mxu0 %v450
        %472 = vmatprep.subr.bf16.mxu0 0
        %473 = vmatpush1.bf16.msra.mxu0 %v451
        %474 = vmatprep.subr.bf16.mxu0 0
        %475 = vmatpush1.bf16.msra.mxu0 %v452
        %476 = vmatprep.subr.bf16.mxu0 0
        %477 = vmatpush1.bf16.msra.mxu0 %v453
        %478 = vmatprep.subr.bf16.mxu0 0
        %479 = vmatpush1.bf16.msra.mxu0 0
        %480 = vmatprep.subr.bf16.mxu0 0
        %481 = vmatpush1.bf16.msra.mxu0 0
        %482 = vmatprep.subr.bf16.mxu0 0
        %483 = vmatpush1.bf16.msra.mxu0 0
        %484 = vmatprep.subr.bf16.mxu0 0
        %485 = vmatpush1.bf16.msra.mxu0 0
        %486 = vmatprep.subr.bf16.mxu0 0
        %487 = vmatpush1.bf16.msra.mxu0 0
        %488 = vmatprep.subr.bf16.mxu0 0
        %489 = vmatpush1.bf16.msra.mxu0 0
        %490 = vmatprep.subr.bf16.mxu0 0
        %491 = vmatpush1.bf16.msra.mxu0 0
        %492 = vmatprep.subr.bf16.mxu0 0
        %493 = vmatpush1.bf16.msra.mxu0 0
        %494 = vmatprep.mubr.bf16.mxu0 0
        %495 = vmatmul.mubr.bf16.gmra.mrb[0].mxu0 %v398
        %v496 = vpop.f32.mrb[0].mxu0
        %v497 = vadd.f32 0.0, %v496
        %v498 = vpop.f32.mrb[0].mxu0
        %v499 = vpop.f32.mrb[0].mxu0
        %v500 = vadd.f32 0.0, %v499
        %v501 = vpop.f32.mrb[0].mxu0
        %502 = vmatprep.mubr.bf16.mxu0 0
        %503 = vmatmul.mubr.bf16.gmra.mrb[0].mxu0 %v399
        %v504 = vpop.f32.mrb[0].mxu0
        %v505 = vadd.f32 0.0, %v504
        %v506 = vpop.f32.mrb[0].mxu0
        %v507 = vpop.f32.mrb[0].mxu0
        %v508 = vadd.f32 0.0, %v507
        %v509 = vpop.f32.mrb[0].mxu0
        %510 = vmatprep.mubr.bf16.mxu0 0
        %511 = vmatmul.mubr.bf16.gmra.mrb[0].mxu0 %v400
        %v512 = vpop.f32.mrb[0].mxu0
        %v513 = vadd.f32 0.0, %v512
        %v514 = vpop.f32.mrb[0].mxu0
        %v515 = vpop.f32.mrb[0].mxu0
        %v516 = vadd.f32 0.0, %v515
        %v517 = vpop.f32.mrb[0].mxu0
        %518 = vmatprep.mubr.bf16.mxu0 0
        %519 = vmatmul.mubr.bf16.gmra.mrb[0].mxu0 %v401
        %v520 = vpop.f32.mrb[0].mxu0
        %v521 = vadd.f32 0.0, %v520
        %v522 = vpop.f32.mrb[0].mxu0
        %v523 = vpop.f32.mrb[0].mxu0
        %v524 = vadd.f32 0.0, %v523
        %v525 = vpop.f32.mrb[0].mxu0
        %526 = vmatprep.mubr.bf16.mxu0 0
        %527 = vmatmul.mubr.bf16.gmra.mrb[0].mxu0 %v402
        %v528 = vpop.f32.mrb[0].mxu0
        %v529 = vadd.f32 0.0, %v528
        %v530 = vpop.f32.mrb[0].mxu0
        %v531 = vpop.f32.mrb[0].mxu0
        %v532 = vadd.f32 0.0, %v531
        %v533 = vpop.f32.mrb[0].mxu0
        %534 = vmatprep.mubr.bf16.mxu0 0
        %535 = vmatmul.mubr.bf16.gmra.mrb[0].mxu0 %v403
        %v536 = vpop.f32.mrb[0].mxu0
        %v537 = vadd.f32 0.0, %v536
        %v538 = vpop.f32.mrb[0].mxu0
        %v539 = vpop.f32.mrb[0].mxu0
        %v540 = vadd.f32 0.0, %v539
        %v541 = vpop.f32.mrb[0].mxu0
        %542 = vmatprep.mubr.bf16.mxu0 0
        %543 = vmatmul.mubr.bf16.gmra.mrb[0].mxu0 %v404
        %v544 = vpop.f32.mrb[0].mxu0
        %v545 = vadd.f32 0.0, %v544
        %v546 = vpop.f32.mrb[0].mxu0
        %v547 = vpop.f32.mrb[0].mxu0
        %v548 = vadd.f32 0.0, %v547
        %v549 = vpop.f32.mrb[0].mxu0
        %550 = vmatprep.mubr.bf16.mxu0 0
        %551 = vmatmul.mubr.bf16.gmra.mrb[0].mxu0 %v405
        %v552 = vpop.f32.mrb[0].mxu0
        %v553 = vadd.f32 0.0, %v552
        %v554 = vpop.f32.mrb[0].mxu0
        %v555 = vpop.f32.mrb[0].mxu0
        %v556 = vadd.f32 0.0, %v555
        %v557 = vpop.f32.mrb[0].mxu0
        %558 = vdwg.mxu0
        %v575 = vunpack.c.l.b16 %v296
        %v576 = vunpack.c.l.b16 %v297
        %v577 = vunpack.c.l.b16 %v298
        %v578 = vunpack.c.l.b16 %v299
        %v579 = vunpack.c.l.b16 %v300
        %v580 = vunpack.c.l.b16 %v301
        %v581 = vunpack.c.l.b16 %v302
        %v582 = vunpack.c.l.b16 %v303
        %v583 = vunpack.c.l.b16 %v304
        %v584 = vunpack.c.l.b16 %v305
        %v585 = vunpack.c.l.b16 %v306
        %v586 = vunpack.c.l.b16 %v307
        %v587 = vunpack.c.l.b16 %v308
        %v588 = vunpack.c.l.b16 %v309
        %v589 = vunpack.c.l.b16 %v310
        %v590 = vunpack.c.l.b16 %v311
        %v591 = vpack.c.b16 %v576, %v575
        %v592 = vpack.c.b16 %v578, %v577
        %v593 = vpack.c.b16 %v580, %v579
        %v594 = vpack.c.b16 %v582, %v581
        %v595 = vpack.c.b16 %v584, %v583
        %v596 = vpack.c.b16 %v586, %v585
        %v597 = vpack.c.b16 %v588, %v587
        %v598 = vpack.c.b16 %v590, %v589
        %v623 = vunpack.c.l.b16 %v312
        %v624 = vunpack.c.l.b16 %v313
        %v625 = vunpack.c.l.b16 %v314
        %v626 = vunpack.c.l.b16 %v315
        %v627 = vunpack.c.l.b16 %v316
        %v628 = vunpack.c.l.b16 %v317
        %v629 = vunpack.c.l.b16 %v318
        %v630 = vunpack.c.l.b16 %v319
        %v631 = vunpack.c.l.b16 %v320
        %v632 = vunpack.c.l.b16 %v321
        %v633 = vunpack.c.l.b16 %v322
        %v634 = vunpack.c.l.b16 %v323
        %v635 = vunpack.c.l.b16 %v324
        %v636 = vunpack.c.l.b16 %v325
        %v637 = vunpack.c.l.b16 %v326
        %v638 = vunpack.c.l.b16 %v327
        %v639 = vpack.c.b16 %v624, %v623
        %v640 = vpack.c.b16 %v626, %v625
        %v641 = vpack.c.b16 %v628, %v627
        %v642 = vpack.c.b16 %v630, %v629
        %v643 = vpack.c.b16 %v632, %v631
        %v644 = vpack.c.b16 %v634, %v633
        %v645 = vpack.c.b16 %v636, %v635
        %v646 = vpack.c.b16 %v638, %v637
        %655 = vmatprep.subr.bf16.mxu0 0
        %656 = vmatpush1.bf16.msra.mxu0 %v639
        %657 = vmatprep.subr.bf16.mxu0 0
        %658 = vmatpush1.bf16.msra.mxu0 %v640
        %659 = vmatprep.subr.bf16.mxu0 0
        %660 = vmatpush1.bf16.msra.mxu0 %v641
        %661 = vmatprep.subr.bf16.mxu0 0
        %662 = vmatpush1.bf16.msra.mxu0 %v642
        %663 = vmatprep.subr.bf16.mxu0 0
        %664 = vmatpush1.bf16.msra.mxu0 %v643
        %665 = vmatprep.subr.bf16.mxu0 0
        %666 = vmatpush1.bf16.msra.mxu0 %v644
        %667 = vmatprep.subr.bf16.mxu0 0
        %668 = vmatpush1.bf16.msra.mxu0 %v645
        %669 = vmatprep.subr.bf16.mxu0 0
        %670 = vmatpush1.bf16.msra.mxu0 %v646
        %671 = vmatprep.subr.bf16.mxu0 0
        %672 = vmatpush1.bf16.msra.mxu0 0
        %673 = vmatprep.subr.bf16.mxu0 0
        %674 = vmatpush1.bf16.msra.mxu0 0
        %675 = vmatprep.subr.bf16.mxu0 0
        %676 = vmatpush1.bf16.msra.mxu0 0
        %677 = vmatprep.subr.bf16.mxu0 0
        %678 = vmatpush1.bf16.msra.mxu0 0
        %679 = vmatprep.subr.bf16.mxu0 0
        %680 = vmatpush1.bf16.msra.mxu0 0
        %681 = vmatprep.subr.bf16.mxu0 0
        %682 = vmatpush1.bf16.msra.mxu0 0
        %683 = vmatprep.subr.bf16.mxu0 0
        %684 = vmatpush1.bf16.msra.mxu0 0
        %685 = vmatprep.subr.bf16.mxu0 0
        %686 = vmatpush1.bf16.msra.mxu0 0
        %687 = vmatprep.mubr.bf16.mxu0 0
        %688 = vmatmul.mubr.bf16.gmra.mrb[0].mxu0 %v591
        %v689 = vpop.f32.mrb[0].mxu0
        %v690 = vadd.f32 %v497, %v689
        %v691 = vpop.f32.mrb[0].mxu0
        %v692 = vpop.f32.mrb[0].mxu0
        %v693 = vadd.f32 %v500, %v692
        %v694 = vpop.f32.mrb[0].mxu0
        %695 = vmatprep.mubr.bf16.mxu0 0
        %696 = vmatmul.mubr.bf16.gmra.mrb[0].mxu0 %v592
        %v697 = vpop.f32.mrb[0].mxu0
        %v698 = vadd.f32 %v505, %v697
        %v699 = vpop.f32.mrb[0].mxu0
        %v700 = vpop.f32.mrb[0].mxu0
        %v701 = vadd.f32 %v508, %v700
        %v702 = vpop.f32.mrb[0].mxu0
        %703 = vmatprep.mubr.bf16.mxu0 0
        %704 = vmatmul.mubr.bf16.gmra.mrb[0].mxu0 %v593
        %v705 = vpop.f32.mrb[0].mxu0
        %v706 = vadd.f32 %v513, %v705
        %v707 = vpop.f32.mrb[0].mxu0
        %v708 = vpop.f32.mrb[0].mxu0
        %v709 = vadd.f32 %v516, %v708
        %v710 = vpop.f32.mrb[0].mxu0
        %711 = vmatprep.mubr.bf16.mxu0 0
        %712 = vmatmul.mubr.bf16.gmra.mrb[0].mxu0 %v594
        %v713 = vpop.f32.mrb[0].mxu0
        %v714 = vadd.f32 %v521, %v713
        %v715 = vpop.f32.mrb[0].mxu0
        %v716 = vpop.f32.mrb[0].mxu0
        %v717 = vadd.f32 %v524, %v716
        %v718 = vpop.f32.mrb[0].mxu0
        %719 = vmatprep.mubr.bf16.mxu0 0
        %720 = vmatmul.mubr.bf16.gmra.mrb[0].mxu0 %v595
        %v721 = vpop.f32.mrb[0].mxu0
        %v722 = vadd.f32 %v529, %v721
        %v723 = vpop.f32.mrb[0].mxu0
        %v724 = vpop.f32.mrb[0].mxu0
        %v725 = vadd.f32 %v532, %v724
        %v726 = vpop.f32.mrb[0].mxu0
        %727 = vmatprep.mubr.bf16.mxu0 0
        %728 = vmatmul.mubr.bf16.gmra.mrb[0].mxu0 %v596
        %v729 = vpop.f32.mrb[0].mxu0
        %v730 = vadd.f32 %v537, %v729
        %v731 = vpop.f32.mrb[0].mxu0
        %v732 = vpop.f32.mrb[0].mxu0
        %v733 = vadd.f32 %v540, %v732
        %v734 = vpop.f32.mrb[0].mxu0
        %735 = vmatprep.mubr.bf16.mxu0 0
        %736 = vmatmul.mubr.bf16.gmra.mrb[0].mxu0 %v597
        %v737 = vpop.f32.mrb[0].mxu0
        %v738 = vadd.f32 %v545, %v737
        %v739 = vpop.f32.mrb[0].mxu0
        %v740 = vpop.f32.mrb[0].mxu0
        %v741 = vadd.f32 %v548, %v740
        %v742 = vpop.f32.mrb[0].mxu0
        %743 = vmatprep.mubr.bf16.mxu0 0
        %744 = vmatmul.mubr.bf16.gmra.mrb[0].mxu0 %v598
        %v745 = vpop.f32.mrb[0].mxu0
        %v746 = vadd.f32 %v553, %v745
        %v747 = vpop.f32.mrb[0].mxu0
        %v748 = vpop.f32.mrb[0].mxu0
        %v749 = vadd.f32 %v556, %v748
        %v750 = vpop.f32.mrb[0].mxu0
        %751 = vdwg.mxu0
        %s752 = sadd.s32 %s291, 32
        %s753 = sshra.s32 %s752, 3
        %s754 = sand.u32 %s752, 7
        %s755 = smul.addr %s753, 4
        %s756 = scalar_lea.vmem %s248, %s755 [#allocation2]
        %v757 = vld [vmem:[%s756] sm:$0xf]
        %v758 = vld [vmem:[%s756 + $0x4] sm:$0xf]
        %v759 = vld [vmem:[%s756 + $0x8] sm:$0xf]
        %v760 = vld [vmem:[%s756 + $0xc] sm:$0xf]
        %v761 = vld [vmem:[%s756 + $0x10] sm:$0xf]
        %v762 = vld [vmem:[%s756 + $0x14] sm:$0xf]
        %v763 = vld [vmem:[%s756 + $0x18] sm:$0xf]
        %v764 = vld [vmem:[%s756 + $0x1c] sm:$0xf]
        %v765 = vld [vmem:[%s756 + $0x20] sm:$0xf]
        %v766 = vld [vmem:[%s756 + $0x24] sm:$0xf]
        %v767 = vld [vmem:[%s756 + $0x28] sm:$0xf]
        %v768 = vld [vmem:[%s756 + $0x2c] sm:$0xf]
        %v769 = vld [vmem:[%s756 + $0x30] sm:$0xf]
        %v770 = vld [vmem:[%s756 + $0x34] sm:$0xf]
        %v771 = vld [vmem:[%s756 + $0x38] sm:$0xf]
        %v772 = vld [vmem:[%s756 + $0x3c] sm:$0xf]
        %s773 = scalar_lea.vmem [#allocation5], 128
        %v774 = vld [vmem:[%s773] sm:$0xf]
        %v775 = vld [vmem:[%s773 + $0x4] sm:$0xf]
        %v776 = vld [vmem:[%s773 + $0x8] sm:$0xf]
        %v777 = vld [vmem:[%s773 + $0xc] sm:$0xf]
        %v778 = vld [vmem:[%s773 + $0x10] sm:$0xf]
        %v779 = vld [vmem:[%s773 + $0x14] sm:$0xf]
        %v780 = vld [vmem:[%s773 + $0x18] sm:$0xf]
        %v781 = vld [vmem:[%s773 + $0x1c] sm:$0xf]
        %v782 = vld [vmem:[%s773 + $0x20] sm:$0xf]
        %v783 = vld [vmem:[%s773 + $0x24] sm:$0xf]
        %v784 = vld [vmem:[%s773 + $0x28] sm:$0xf]
        %v785 = vld [vmem:[%s773 + $0x2c] sm:$0xf]
        %v786 = vld [vmem:[%s773 + $0x30] sm:$0xf]
        %v787 = vld [vmem:[%s773 + $0x34] sm:$0xf]
        %v788 = vld [vmem:[%s773 + $0x38] sm:$0xf]
        %v789 = vld [vmem:[%s773 + $0x3c] sm:$0xf]
        %v806 = vunpack.c.l.b16 %v757
        %v807 = vunpack.c.l.b16 %v758
        %v808 = vunpack.c.l.b16 %v759
        %v809 = vunpack.c.l.b16 %v760
        %v810 = vunpack.c.l.b16 %v761
        %v811 = vunpack.c.l.b16 %v762
        %v812 = vunpack.c.l.b16 %v763
        %v813 = vunpack.c.l.b16 %v764
        %v814 = vunpack.c.l.b16 %v765
        %v815 = vunpack.c.l.b16 %v766
        %v816 = vunpack.c.l.b16 %v767
        %v817 = vunpack.c.l.b16 %v768
        %v818 = vunpack.c.l.b16 %v769
        %v819 = vunpack.c.l.b16 %v770
        %v820 = vunpack.c.l.b16 %v771
        %v821 = vunpack.c.l.b16 %v772
        %v822 = vpack.c.b16 %v807, %v806
        %v823 = vpack.c.b16 %v809, %v808
        %v824 = vpack.c.b16 %v811, %v810
        %v825 = vpack.c.b16 %v813, %v812
        %v826 = vpack.c.b16 %v815, %v814
        %v827 = vpack.c.b16 %v817, %v816
        %v828 = vpack.c.b16 %v819, %v818
        %v829 = vpack.c.b16 %v821, %v820
        %v854 = vunpack.c.l.b16 %v774
        %v855 = vunpack.c.l.b16 %v775
        %v856 = vunpack.c.l.b16 %v776
        %v857 = vunpack.c.l.b16 %v777
        %v858 = vunpack.c.l.b16 %v778
        %v859 = vunpack.c.l.b16 %v779
        %v860 = vunpack.c.l.b16 %v780
        %v861 = vunpack.c.l.b16 %v781
        %v862 = vunpack.c.l.b16 %v782
        %v863 = vunpack.c.l.b16 %v783
        %v864 = vunpack.c.l.b16 %v784
        %v865 = vunpack.c.l.b16 %v785
        %v866 = vunpack.c.l.b16 %v786
        %v867 = vunpack.c.l.b16 %v787
        %v868 = vunpack.c.l.b16 %v788
        %v869 = vunpack.c.l.b16 %v789
        %v870 = vpack.c.b16 %v855, %v854
        %v871 = vpack.c.b16 %v857, %v856
        %v872 = vpack.c.b16 %v859, %v858
        %v873 = vpack.c.b16 %v861, %v860
        %v874 = vpack.c.b16 %v863, %v862
        %v875 = vpack.c.b16 %v865, %v864
        %v876 = vpack.c.b16 %v867, %v866
        %v877 = vpack.c.b16 %v869, %v868
        %886 = vmatprep.subr.bf16.mxu0 0
        %887 = vmatpush1.bf16.msra.mxu0 %v870
        %888 = vmatprep.subr.bf16.mxu0 0
        %889 = vmatpush1.bf16.msra.mxu0 %v871
        %890 = vmatprep.subr.bf16.mxu0 0
        %891 = vmatpush1.bf16.msra.mxu0 %v872
        %892 = vmatprep.subr.bf16.mxu0 0
        %893 = vmatpush1.bf16.msra.mxu0 %v873
        %894 = vmatprep.subr.bf16.mxu0 0
        %895 = vmatpush1.bf16.msra.mxu0 %v874
        %896 = vmatprep.subr.bf16.mxu0 0
        %897 = vmatpush1.bf16.msra.mxu0 %v875
        %898 = vmatprep.subr.bf16.mxu0 0
        %899 = vmatpush1.bf16.msra.mxu0 %v876
        %900 = vmatprep.subr.bf16.mxu0 0
        %901 = vmatpush1.bf16.msra.mxu0 %v877
        %902 = vmatprep.subr.bf16.mxu0 0
        %903 = vmatpush1.bf16.msra.mxu0 0
        %904 = vmatprep.subr.bf16.mxu0 0
        %905 = vmatpush1.bf16.msra.mxu0 0
        %906 = vmatprep.subr.bf16.mxu0 0
        %907 = vmatpush1.bf16.msra.mxu0 0
        %908 = vmatprep.subr.bf16.mxu0 0
        %909 = vmatpush1.bf16.msra.mxu0 0
        %910 = vmatprep.subr.bf16.mxu0 0
        %911 = vmatpush1.bf16.msra.mxu0 0
        %912 = vmatprep.subr.bf16.mxu0 0
        %913 = vmatpush1.bf16.msra.mxu0 0
        %914 = vmatprep.subr.bf16.mxu0 0
        %915 = vmatpush1.bf16.msra.mxu0 0
        %916 = vmatprep.subr.bf16.mxu0 0
        %917 = vmatpush1.bf16.msra.mxu0 0
        %918 = vmatprep.mubr.bf16.mxu0 0
        %919 = vmatmul.mubr.bf16.gmra.mrb[0].mxu0 %v822
        %v920 = vpop.f32.mrb[0].mxu0
        %v921 = vadd.f32 0.0, %v920
        %v922 = vpop.f32.mrb[0].mxu0
        %v923 = vpop.f32.mrb[0].mxu0
        %v924 = vadd.f32 0.0, %v923
        %v925 = vpop.f32.mrb[0].mxu0
        %926 = vmatprep.mubr.bf16.mxu0 0
        %927 = vmatmul.mubr.bf16.gmra.mrb[0].mxu0 %v823
        %v928 = vpop.f32.mrb[0].mxu0
        %v929 = vadd.f32 0.0, %v928
        %v930 = vpop.f32.mrb[0].mxu0
        %v931 = vpop.f32.mrb[0].mxu0
        %v932 = vadd.f32 0.0, %v931
        %v933 = vpop.f32.mrb[0].mxu0
        %934 = vmatprep.mubr.bf16.mxu0 0
        %935 = vmatmul.mubr.bf16.gmra.mrb[0].mxu0 %v824
        %v936 = vpop.f32.mrb[0].mxu0
        %v937 = vadd.f32 0.0, %v936
        %v938 = vpop.f32.mrb[0].mxu0
        %v939 = vpop.f32.mrb[0].mxu0
        %v940 = vadd.f32 0.0, %v939
        %v941 = vpop.f32.mrb[0].mxu0
        %942 = vmatprep.mubr.bf16.mxu0 0
        %943 = vmatmul.mubr.bf16.gmra.mrb[0].mxu0 %v825
        %v944 = vpop.f32.mrb[0].mxu0
        %v945 = vadd.f32 0.0, %v944
        %v946 = vpop.f32.mrb[0].mxu0
        %v947 = vpop.f32.mrb[0].mxu0
        %v948 = vadd.f32 0.0, %v947
        %v949 = vpop.f32.mrb[0].mxu0
        %950 = vmatprep.mubr.bf16.mxu0 0
        %951 = vmatmul.mubr.bf16.gmra.mrb[0].mxu0 %v826
        %v952 = vpop.f32.mrb[0].mxu0
        %v953 = vadd.f32 0.0, %v952
        %v954 = vpop.f32.mrb[0].mxu0
        %v955 = vpop.f32.mrb[0].mxu0
        %v956 = vadd.f32 0.0, %v955
        %v957 = vpop.f32.mrb[0].mxu0
        %958 = vmatprep.mubr.bf16.mxu0 0
        %959 = vmatmul.mubr.bf16.gmra.mrb[0].mxu0 %v827
        %v960 = vpop.f32.mrb[0].mxu0
        %v961 = vadd.f32 0.0, %v960
        %v962 = vpop.f32.mrb[0].mxu0
        %v963 = vpop.f32.mrb[0].mxu0
        %v964 = vadd.f32 0.0, %v963
        %v965 = vpop.f32.mrb[0].mxu0
        %966 = vmatprep.mubr.bf16.mxu0 0
        %967 = vmatmul.mubr.bf16.gmra.mrb[0].mxu0 %v828
        %v968 = vpop.f32.mrb[0].mxu0
        %v969 = vadd.f32 0.0, %v968
        %v970 = vpop.f32.mrb[0].mxu0
        %v971 = vpop.f32.mrb[0].mxu0
        %v972 = vadd.f32 0.0, %v971
        %v973 = vpop.f32.mrb[0].mxu0
        %974 = vmatprep.mubr.bf16.mxu0 0
        %975 = vmatmul.mubr.bf16.gmra.mrb[0].mxu0 %v829
        %v976 = vpop.f32.mrb[0].mxu0
        %v977 = vadd.f32 0.0, %v976
        %v978 = vpop.f32.mrb[0].mxu0
        %v979 = vpop.f32.mrb[0].mxu0
        %v980 = vadd.f32 0.0, %v979
        %v981 = vpop.f32.mrb[0].mxu0
        %982 = vdwg.mxu0
        %v983 = vadd.f32 %v690, %v921
        %v984 = vadd.f32 %v693, %v924
        %v985 = vadd.f32 %v698, %v929
        %v986 = vadd.f32 %v701, %v932
        %v987 = vadd.f32 %v706, %v937
        %v988 = vadd.f32 %v709, %v940
        %v989 = vadd.f32 %v714, %v945
        %v990 = vadd.f32 %v717, %v948
        %v991 = vadd.f32 %v722, %v953
        %v992 = vadd.f32 %v725, %v956
        %v993 = vadd.f32 %v730, %v961
        %v994 = vadd.f32 %v733, %v964
        %v995 = vadd.f32 %v738, %v969
        %v996 = vadd.f32 %v741, %v972
        %v997 = vadd.f32 %v746, %v977
        %v998 = vadd.f32 %v749, %v980
        %v999 = vld [vmem:[%s285] sm:$0x1]
        %v1001 = vlaneseq
        %v1002 = vshrl.u32 %v1001, 7
        %v1003 = vsub.s32 0, %v1002
        %v1004 = vrot.slane %v999, %v1003
        %v1006 = vmul.f32 %v983, %v1004
        %v1007 = vmul.f32 %v984, %v1004
        %v1008 = vmul.f32 %v985, %v1004
        %v1009 = vmul.f32 %v986, %v1004
        %v1010 = vmul.f32 %v987, %v1004
        %v1011 = vmul.f32 %v988, %v1004
        %v1012 = vmul.f32 %v989, %v1004
        %v1013 = vmul.f32 %v990, %v1004
        %v1014 = vmul.f32 %v991, %v1004
        %v1015 = vmul.f32 %v992, %v1004
        %v1016 = vmul.f32 %v993, %v1004
        %v1017 = vmul.f32 %v994, %v1004
        %v1018 = vmul.f32 %v995, %v1004
        %v1019 = vmul.f32 %v996, %v1004
        %v1020 = vmul.f32 %v997, %v1004
        %v1021 = vmul.f32 %v998, %v1004
        %v1022 = vld [vmem:[%s288] sm:$0x1]
        %v1024 = vlaneseq
        %v1025 = vshrl.u32 %v1024, 7
        %v1026 = vsub.s32 0, %v1025
        %v1027 = vrot.slane %v1022, %v1026
        %v1029 = vadd.f32 %v1006, %v1027
        %v1030 = vadd.f32 %v1007, %v1027
        %v1031 = vadd.f32 %v1008, %v1027
        %v1032 = vadd.f32 %v1009, %v1027
        %v1033 = vadd.f32 %v1010, %v1027
        %v1034 = vadd.f32 %v1011, %v1027
        %v1035 = vadd.f32 %v1012, %v1027
        %v1036 = vadd.f32 %v1013, %v1027
        %v1037 = vadd.f32 %v1014, %v1027
        %v1038 = vadd.f32 %v1015, %v1027
        %v1039 = vadd.f32 %v1016, %v1027
        %v1040 = vadd.f32 %v1017, %v1027
        %v1041 = vadd.f32 %v1018, %v1027
        %v1042 = vadd.f32 %v1019, %v1027
        %v1043 = vadd.f32 %v1020, %v1027
        %v1044 = vadd.f32 %v1021, %v1027
        %v1045 = vmax.f32 %v1029, 0.0
        %v1046 = vmax.f32 %v1030, 0.0
        %v1047 = vmax.f32 %v1031, 0.0
        %v1048 = vmax.f32 %v1032, 0.0
        %v1049 = vmax.f32 %v1033, 0.0
        %v1050 = vmax.f32 %v1034, 0.0
        %v1051 = vmax.f32 %v1035, 0.0
        %v1052 = vmax.f32 %v1036, 0.0
        %v1053 = vmax.f32 %v1037, 0.0
        %v1054 = vmax.f32 %v1038, 0.0
        %v1055 = vmax.f32 %v1039, 0.0
        %v1056 = vmax.f32 %v1040, 0.0
        %v1057 = vmax.f32 %v1041, 0.0
        %v1058 = vmax.f32 %v1042, 0.0
        %v1059 = vmax.f32 %v1043, 0.0
        %v1060 = vmax.f32 %v1044, 0.0
        %1061 = vst [vmem:[%s282] sm:$0xff] %v1045
        %1062 = vst [vmem:[%s282 + $0x8] sm:$0xff] %v1046
        %1063 = vst [vmem:[%s282 + $0x10] sm:$0xff] %v1047
        %1064 = vst [vmem:[%s282 + $0x18] sm:$0xff] %v1048
        %1065 = vst [vmem:[%s282 + $0x20] sm:$0xff] %v1049
        %1066 = vst [vmem:[%s282 + $0x28] sm:$0xff] %v1050
        %1067 = vst [vmem:[%s282 + $0x30] sm:$0xff] %v1051
        %1068 = vst [vmem:[%s282 + $0x38] sm:$0xff] %v1052
        %1069 = vst [vmem:[%s282 + $0x40] sm:$0xff] %v1053
        %1070 = vst [vmem:[%s282 + $0x48] sm:$0xff] %v1054
        %1071 = vst [vmem:[%s282 + $0x50] sm:$0xff] %v1055
        %1072 = vst [vmem:[%s282 + $0x58] sm:$0xff] %v1056
        %1073 = vst [vmem:[%s282 + $0x60] sm:$0xff] %v1057
        %1074 = vst [vmem:[%s282 + $0x68] sm:$0xff] %v1058
        %1075 = vst [vmem:[%s282 + $0x70] sm:$0xff] %v1059
        %1076 = vst [vmem:[%s282 + $0x78] sm:$0xff] %v1060
        %s1077 = sand.u32 %s157, 1
        %s1078 = scalar_lea.sflag [#allocation4], %s1077
        %s1079 = sand.u32 %s157, 1
        %s1080 = smul.addr %s1079, 128
        %s1081 = scalar_lea.vmem [#allocation7], %s1080
        // Predicated region
        $region45: #{tpu_custom_call.1} parent=35 // pred_check
          %p1082 = pneg %p167
        $region46: #{tpu_custom_call.1} parent=35 // pred_check_branch
          %1084 = sbr.rel (%p1082) target = $region48
        $region47: #{tpu_custom_call.1} parent=35 // pred_region
          %s1085 = smul.u32 16, %s29
          %s1087 = ssub.s32 2048, 2048
          %1088 = vsyncadd %s1078, %s1087
          %s1089 = sadd.s32 %s28, %s1085
          %s1090 = smul.addr %s27, 32
          %s1091 = sadd.s32 %s1089, %s1090
          %s1092 = smul.addr %s1091, 128
          %s1093 = scalar_lea.hbm %s4, %s1092
          %s1094 = sshll.u32 %s1081, 4
          %s1095 = int_to_ptr.vmem [resolvable:$true] %s1094
          %1100 = dma.vmem_to_hbm [thread:$0]  %s1095, 2048, %s1093, %s1078, 128, 128, 8
        $region48: #{tpu_custom_call.1} parent=35 // pred_fallthru
          _
      $region36: #{tpu_custom_call.1} parent=5 // pred_fallthru
        _
      %p1101 = scmp.le.s32.totalorder 2, %s17
      // Predicated region
      $region49: #{tpu_custom_call.1} parent=5 // pred_check
        %p1102 = pneg %p1101
      $region50: #{tpu_custom_call.1} parent=5 // pred_check_branch
        %1104 = sbr.rel (%p1102) target = $region52
      $region51: #{tpu_custom_call.1} parent=5 // pred_region
        %s1105 = ssub.s32 %s17, 2
        // Predicated region
        $region53: #{tpu_custom_call.1} parent=51 // pred_check
          %p1106 = pneg %p173
        $region54: #{tpu_custom_call.1} parent=51 // pred_check_branch
          %1108 = sbr.rel (%p1106) target = $region56
        $region55: #{tpu_custom_call.1} parent=51 // pred_region
          %s1109 = sand.u32 %s158, 1
          %s1110 = scalar_lea.sflag [#allocation4], %s1109
          %s1111 = sand.u32 %s158, 1
          %s1112 = smul.addr %s1111, 128
          %s1113 = scalar_lea.vmem [#allocation7], %s1112
          %1114 = dma.done %s1110, 2048
        $region56: #{tpu_custom_call.1} parent=51 // pred_fallthru
          _
      $region52: #{tpu_custom_call.1} parent=5 // pred_fallthru
        _
    $region6: #{tpu_custom_call.1} parent=1 // loop_footer
      %s21 = sadd.s32 1, %s17
    $region7: #{tpu_custom_call.1} parent=1 // loop_footer_branch
      %16 = sbr.rel target = $region3
    $region8: #{tpu_custom_call.1} parent=1 // loop_exit
      _
    %1115 = vsyncpa [#allocation3], 1
    %s1116 = scalar_lea.sflag [#allocation3], 1
    %1117 = vsyncpa %s1116, 1
    %1118 = vsyncpa [#allocation6], 1
    %1119 = vsyncpa [#allocation4], 1
    %s1120 = scalar_lea.sflag [#allocation4], 1
    %1121 = vsyncpa %s1120, 1

</llo_original>
